<compile_context>
chip_gen: v7x
topology: tpu7x:2x2x1
jax: 0.10.0
libtpu: 0.0.40
codegen_flags: <defaults>
</compile_context>

<pallas_src>
import functools

import jax
import jax.numpy as jnp
import numpy as np
from jax import lax
from jax.experimental import pallas as pl
from jax.experimental.pallas import tpu as pltpu

BN_EPS = 1e-5
_SUBLANES = 8  # f32 sublane count; channel dims are padded to a multiple of this.


def _generator_block_kernel(x_ref, masks_ref, w1_ref, b1_ref, w2s_ref, b2s_ref,
                            out_ref, *, W, dilation):
    """Fused BN1->ReLU->conv3x3->BN2->ReLU->(conv3x3 + fused 1x1 shortcut)."""
    d = dilation
    N, Cin, P = x_ref.shape          # P = H * W (lane axis, multiple of 128)
    inv_R = 1.0 / float(N * P)       # BN reduction size per channel

    # Static tap geometry.  tap[p] = h[p + off] (zero outside the image),
    # off = dh*W + dw.  A roll of the flattened HW axis by (-off) mod P plus an
    # edge mask realizes exactly that: wrapped elements only ever land on
    # masked-out positions.
    shifts, is_center = [], []
    for kh in range(3):
        for kw in range(3):
            dh, dw = d * (kh - 1), d * (kw - 1)
            shifts.append((-(dh * W + dw)) % P)
            is_center.append(dh == 0 and dw == 0)

    # Hoist mask loads (shared by both 3x3 convs).
    mask_vals = [masks_ref[t] for t in range(9)]       # each (1, P) f32

    def im2col(h2d):
        # h2d: (C, P) -> (9*C, P) via lane rolls + edge masks (no padded scratch,
        # no strided-slice reshapes).
        cols = []
        for t in range(9):
            if is_center[t]:
                cols.append(h2d)                        # centre tap: mask == 1
            else:
                cols.append(mask_vals[t] * pltpu.roll(h2d, shifts[t], axis=1))
        return jnp.concatenate(cols, axis=0)

    def bn_relu(vs):
        # vs: list over batch of (C, P).  Training-mode BatchNorm2d (biased batch
        # variance, gamma=1, beta=0) fused with ReLU into scale-then-max.
        mean = sum(jnp.sum(v, axis=1, keepdims=True) for v in vs) * inv_R
        cent = [v - mean for v in vs]
        var = sum(jnp.sum(c * c, axis=1, keepdims=True) for c in cent) * inv_R
        scale = lax.rsqrt(var + BN_EPS)
        return [jnp.maximum(c * scale, 0.0) for c in cent]

    xs = [x_ref[n] for n in range(N)]                   # raw input, (Cin, P) each

    # BN1 + ReLU, then conv_1 as a single im2col dot per image.
    h1 = bn_relu(xs)
    w1 = w1_ref[...]                                    # (Cout, 9*Cin)
    b1 = b1_ref[...]                                    # (Cout, 1)
    y1 = [jnp.dot(w1, im2col(h), preferred_element_type=jnp.float32) + b1
          for h in h1]

    # BN2 + ReLU, then conv_2 fused with the 1x1 shortcut: one dot per image over
    # the concatenated [im2col(h2) ; raw x] operand.
    h2 = bn_relu(y1)
    w2s = w2s_ref[...]                                  # (Cout, 9*Cout + Cin)
    b2s = b2s_ref[...]                                  # (Cout, 1)  (= b2 + bs)
    for n in range(N):
        aug = jnp.concatenate([im2col(h2[n]), xs[n]], axis=0)
        out_ref[n] = (jnp.dot(w2s, aug, preferred_element_type=jnp.float32)
                      + b2s).astype(out_ref.dtype)


def _pad_axis(a, axis, multiple):
    pad = (-a.shape[axis]) % multiple
    if pad == 0:
        return a
    widths = [(0, 0)] * a.ndim
    widths[axis] = (0, pad)
    return jnp.pad(a, widths)


def _tap_masks(H, W, dilation):
    """Static (9, 1, H*W) f32 validity masks for the 3x3 taps (built with numpy)."""
    p = np.arange(H * W)
    row, col = p // W, p % W
    masks = np.zeros((9, 1, H * W), np.float32)
    t = 0
    for kh in range(3):
        for kw in range(3):
            dh, dw = dilation * (kh - 1), dilation * (kw - 1)
            ok = ((row + dh >= 0) & (row + dh < H) &
                  (col + dw >= 0) & (col + dw < W))
            masks[t, 0] = ok.astype(np.float32)
            t += 1
    return jnp.asarray(masks)


def generator_upsampling_block(x_nchw, params, *, dilation=1, upsampling_factor=1):
    """NCHW in / NCHW out, matching the PyTorch module's forward (default config)."""
    assert upsampling_factor == 1, "upsampling_factor > 1 not implemented"
    w1, b1, w2, b2, ws, bs = params
    N, Cin, H, W = x_nchw.shape
    Cout = w1.shape[-1]
    P = H * W
    assert P % 128 == 0, "H*W must be a multiple of 128 for the lane-dense layout"

    cin_p = Cin + (-Cin) % _SUBLANES
    cout_p = Cout + (-Cout) % _SUBLANES

    # Activations: NCHW -> (N, C, H*W) (free reshape, no transpose), channels
    # zero-padded to a sublane multiple.
    x2 = _pad_axis(x_nchw.reshape(N, Cin, P).astype(jnp.float32), 1, _SUBLANES)

    # conv_1 weights HWIO -> (Cout_p, 9*Cin_p); k-index = (kh*3 + kw)*Cin_p + ci.
    w1_p = _pad_axis(_pad_axis(w1, 2, _SUBLANES), 3, _SUBLANES)
    w1_mat = jnp.transpose(w1_p, (3, 0, 1, 2)).reshape(cout_p, 9 * cin_p)
    # conv_2 weights fused with the 1x1 shortcut weights along the K axis.
    w2_p = _pad_axis(_pad_axis(w2, 2, _SUBLANES), 3, _SUBLANES)
    w2_mat = jnp.transpose(w2_p, (3, 0, 1, 2)).reshape(cout_p, 9 * cout_p)
    ws_mat = jnp.transpose(_pad_axis(_pad_axis(ws, 0, _SUBLANES), 1, _SUBLANES))
    w2s_mat = jnp.concatenate([w2_mat, ws_mat], axis=1)   # (Cout_p, 9*Cout_p+Cin_p)
    b1_col = _pad_axis(b1, 0, _SUBLANES).reshape(cout_p, 1)
    b2s_col = _pad_axis(b2 + bs, 0, _SUBLANES).reshape(cout_p, 1)

    masks = _tap_masks(H, W, dilation)

    kernel = functools.partial(_generator_block_kernel, W=W, dilation=dilation)
    out = pl.pallas_call(
        kernel,
        out_shape=jax.ShapeDtypeStruct((N, cout_p, P), jnp.float32),
        in_specs=[pl.BlockSpec(memory_space=pltpu.MemorySpace.VMEM)] * 6,
        out_specs=pl.BlockSpec(memory_space=pltpu.MemorySpace.VMEM),
        compiler_params=pltpu.CompilerParams(vmem_limit_bytes=32 * 1024 * 1024),
    )(x2, masks, w1_mat, b1_col, w2s_mat, b2s_col)

    # (N, Cout_p, H*W) -> NCHW, dropping channel padding.
    return out[:, :Cout, :].reshape(N, Cout, H, W)


def init_params(key, in_channels, out_channels):
    """Xavier-uniform conv weights (biases = 0), matching init_xavier_uniform."""
    k1, k2, k3 = jax.random.split(key, 3)

    def xavier(k, shape, fan_in, fan_out):
        bound = float(np.sqrt(6.0 / (fan_in + fan_out)))
        return jax.random.uniform(k, shape, jnp.float32, -bound, bound)

    # HWIO layouts (PyTorch weights are OIHW; fans computed the same way).
    w1 = xavier(k1, (3, 3, in_channels, out_channels), in_channels * 9, out_channels * 9)
    w2 = xavier(k2, (3, 3, out_channels, out_channels), out_channels * 9, out_channels * 9)
    ws = xavier(k3, (in_channels, out_channels), in_channels, out_channels)
    b1 = jnp.zeros((out_channels,), jnp.float32)
    b2 = jnp.zeros((out_channels,), jnp.float32)
    bs = jnp.zeros((out_channels,), jnp.float32)
    return w1, b1, w2, b2, ws, bs


def reference(x_nchw, params, *, dilation=1):
    """Pure-JAX reference (lax.conv) for correctness checking."""
    w1, b1, w2, b2, ws, bs = params
    d = dilation
    x = jnp.transpose(x_nchw, (0, 2, 3, 1))

    def bn_relu(v):
        m = jnp.mean(v, axis=(0, 1, 2), keepdims=True)
        var = jnp.mean((v - m) ** 2, axis=(0, 1, 2), keepdims=True)
        return jnp.maximum((v - m) * lax.rsqrt(var + BN_EPS), 0.0)

    def conv3(v, w, b):
        return lax.conv_general_dilated(
            v, w, window_strides=(1, 1), padding=[(d, d), (d, d)],
            rhs_dilation=(d, d),
            dimension_numbers=("NHWC", "HWIO", "NHWC")) + b

    h = conv3(bn_relu(x), w1, b1)
    h = conv3(bn_relu(h), w2, b2)
    sc = jnp.einsum("nhwc,co->nhwo", x, ws) + bs
    return jnp.transpose(h + sc, (0, 3, 1, 2))


if __name__ == "__main__":
    key = jax.random.PRNGKey(0)
    kx, kp = jax.random.split(key)

    in_channels, out_channels = 4, 8
    x = jax.random.normal(kx, (2, in_channels, 16, 16), jnp.float32)   # NCHW
    params = init_params(kp, in_channels, out_channels)

    out = generator_upsampling_block(x, params, dilation=1, upsampling_factor=1)
    out = jax.block_until_ready(out)

    ref = reference(x, params, dilation=1)
    np.testing.assert_allclose(np.asarray(out), np.asarray(ref), rtol=1e-4, atol=1e-4)
    print("KERNEL_OK")
</pallas_src>

<mosaic_0001>
module attributes {stable_mosaic.version = 11 : i64} {
  func.func @_generator_block_kernel(%arg0: memref<2x8x256xf32, #tpu.memory_space<vmem>>, %arg1: memref<9x1x256xf32, #tpu.memory_space<vmem>>, %arg2: memref<8x72xf32, #tpu.memory_space<vmem>>, %arg3: memref<8x1xf32, #tpu.memory_space<vmem>>, %arg4: memref<8x80xf32, #tpu.memory_space<vmem>>, %arg5: memref<8x1xf32, #tpu.memory_space<vmem>>, %arg6: memref<2x8x256xf32, #tpu.memory_space<vmem>>) attributes {dimension_semantics = [], scalar_prefetch = 0 : i64, scratch_operands = 0 : i64, tpu.core_type = #tpu.core_type<tc>} {
    %c0 = arith.constant 0 : index
    %c0_0 = arith.constant 0 : index
    %c0_1 = arith.constant 0 : index
    %0 = vector.load %arg1[%c0, %c0_0, %c0_1] : memref<9x1x256xf32, #tpu.memory_space<vmem>>, vector<1x1x256xf32>
    %1 = vector.shape_cast %0 : vector<1x1x256xf32> to vector<1x256xf32>
    %c1 = arith.constant 1 : index
    %c0_2 = arith.constant 0 : index
    %c0_3 = arith.constant 0 : index
    %2 = vector.load %arg1[%c1, %c0_2, %c0_3] : memref<9x1x256xf32, #tpu.memory_space<vmem>>, vector<1x1x256xf32>
    %3 = vector.shape_cast %2 : vector<1x1x256xf32> to vector<1x256xf32>
    %c2 = arith.constant 2 : index
    %c0_4 = arith.constant 0 : index
    %c0_5 = arith.constant 0 : index
    %4 = vector.load %arg1[%c2, %c0_4, %c0_5] : memref<9x1x256xf32, #tpu.memory_space<vmem>>, vector<1x1x256xf32>
    %5 = vector.shape_cast %4 : vector<1x1x256xf32> to vector<1x256xf32>
    %c3 = arith.constant 3 : index
    %c0_6 = arith.constant 0 : index
    %c0_7 = arith.constant 0 : index
    %6 = vector.load %arg1[%c3, %c0_6, %c0_7] : memref<9x1x256xf32, #tpu.memory_space<vmem>>, vector<1x1x256xf32>
    %7 = vector.shape_cast %6 : vector<1x1x256xf32> to vector<1x256xf32>
    %c5 = arith.constant 5 : index
    %c0_8 = arith.constant 0 : index
    %c0_9 = arith.constant 0 : index
    %8 = vector.load %arg1[%c5, %c0_8, %c0_9] : memref<9x1x256xf32, #tpu.memory_space<vmem>>, vector<1x1x256xf32>
    %9 = vector.shape_cast %8 : vector<1x1x256xf32> to vector<1x256xf32>
    %c6 = arith.constant 6 : index
    %c0_10 = arith.constant 0 : index
    %c0_11 = arith.constant 0 : index
    %10 = vector.load %arg1[%c6, %c0_10, %c0_11] : memref<9x1x256xf32, #tpu.memory_space<vmem>>, vector<1x1x256xf32>
    %11 = vector.shape_cast %10 : vector<1x1x256xf32> to vector<1x256xf32>
    %c7 = arith.constant 7 : index
    %c0_12 = arith.constant 0 : index
    %c0_13 = arith.constant 0 : index
    %12 = vector.load %arg1[%c7, %c0_12, %c0_13] : memref<9x1x256xf32, #tpu.memory_space<vmem>>, vector<1x1x256xf32>
    %13 = vector.shape_cast %12 : vector<1x1x256xf32> to vector<1x256xf32>
    %c8 = arith.constant 8 : index
    %c0_14 = arith.constant 0 : index
    %c0_15 = arith.constant 0 : index
    %14 = vector.load %arg1[%c8, %c0_14, %c0_15] : memref<9x1x256xf32, #tpu.memory_space<vmem>>, vector<1x1x256xf32>
    %15 = vector.shape_cast %14 : vector<1x1x256xf32> to vector<1x256xf32>
    %c0_16 = arith.constant 0 : index
    %c0_17 = arith.constant 0 : index
    %c0_18 = arith.constant 0 : index
    %16 = vector.load %arg0[%c0_16, %c0_17, %c0_18] : memref<2x8x256xf32, #tpu.memory_space<vmem>>, vector<1x8x256xf32>
    %17 = vector.shape_cast %16 : vector<1x8x256xf32> to vector<8x256xf32>
    %c1_19 = arith.constant 1 : index
    %c0_20 = arith.constant 0 : index
    %c0_21 = arith.constant 0 : index
    %18 = vector.load %arg0[%c1_19, %c0_20, %c0_21] : memref<2x8x256xf32, #tpu.memory_space<vmem>>, vector<1x8x256xf32>
    %19 = vector.shape_cast %18 : vector<1x8x256xf32> to vector<8x256xf32>
    %cst = arith.constant dense<0.000000e+00> : vector<8xf32>
    %20 = vector.multi_reduction <add>, %17, %cst [1] : vector<8x256xf32> to vector<8xf32>
    %21 = vector.shape_cast %20 : vector<8xf32> to vector<8x1xf32>
    %cst_22 = arith.constant 0.000000e+00 : f32
    %22 = vector.broadcast %cst_22 : f32 to vector<8x1xf32>
    %23 = arith.addf %22, %21 : vector<8x1xf32>
    %cst_23 = arith.constant dense<0.000000e+00> : vector<8xf32>
    %24 = vector.multi_reduction <add>, %19, %cst_23 [1] : vector<8x256xf32> to vector<8xf32>
    %25 = vector.shape_cast %24 : vector<8xf32> to vector<8x1xf32>
    %26 = arith.addf %23, %25 : vector<8x1xf32>
    %cst_24 = arith.constant 0.001953125 : f32
    %27 = vector.broadcast %cst_24 : f32 to vector<8x1xf32>
    %28 = arith.mulf %26, %27 : vector<8x1xf32>
    %29 = vector.broadcast %28 : vector<8x1xf32> to vector<8x256xf32>
    %30 = arith.subf %17, %29 : vector<8x256xf32>
    %31 = vector.broadcast %28 : vector<8x1xf32> to vector<8x256xf32>
    %32 = arith.subf %19, %31 : vector<8x256xf32>
    %33 = arith.mulf %30, %30 : vector<8x256xf32>
    %cst_25 = arith.constant dense<0.000000e+00> : vector<8xf32>
    %34 = vector.multi_reduction <add>, %33, %cst_25 [1] : vector<8x256xf32> to vector<8xf32>
    %35 = vector.shape_cast %34 : vector<8xf32> to vector<8x1xf32>
    %cst_26 = arith.constant 0.000000e+00 : f32
    %36 = vector.broadcast %cst_26 : f32 to vector<8x1xf32>
    %37 = arith.addf %36, %35 : vector<8x1xf32>
    %38 = arith.mulf %32, %32 : vector<8x256xf32>
    %cst_27 = arith.constant dense<0.000000e+00> : vector<8xf32>
    %39 = vector.multi_reduction <add>, %38, %cst_27 [1] : vector<8x256xf32> to vector<8xf32>
    %40 = vector.shape_cast %39 : vector<8xf32> to vector<8x1xf32>
    %41 = arith.addf %37, %40 : vector<8x1xf32>
    %cst_28 = arith.constant 0.001953125 : f32
    %42 = vector.broadcast %cst_28 : f32 to vector<8x1xf32>
    %43 = arith.mulf %41, %42 : vector<8x1xf32>
    %cst_29 = arith.constant 9.99999974E-6 : f32
    %44 = vector.broadcast %cst_29 : f32 to vector<8x1xf32>
    %45 = arith.addf %43, %44 : vector<8x1xf32>
    %46 = math.rsqrt %45 : vector<8x1xf32>
    %47 = vector.broadcast %46 : vector<8x1xf32> to vector<8x256xf32>
    %48 = arith.mulf %30, %47 : vector<8x256xf32>
    %cst_30 = arith.constant 0.000000e+00 : f32
    %49 = vector.broadcast %cst_30 : f32 to vector<8x256xf32>
    %50 = arith.maximumf %48, %49 : vector<8x256xf32>
    %51 = vector.broadcast %46 : vector<8x1xf32> to vector<8x256xf32>
    %52 = arith.mulf %32, %51 : vector<8x256xf32>
    %cst_31 = arith.constant 0.000000e+00 : f32
    %53 = vector.broadcast %cst_31 : f32 to vector<8x256xf32>
    %54 = arith.maximumf %52, %53 : vector<8x256xf32>
    %c0_32 = arith.constant 0 : index
    %c0_33 = arith.constant 0 : index
    %55 = vector.load %arg2[%c0_32, %c0_33] : memref<8x72xf32, #tpu.memory_space<vmem>>, vector<8x72xf32>
    %c0_34 = arith.constant 0 : index
    %c0_35 = arith.constant 0 : index
    %56 = vector.load %arg3[%c0_34, %c0_35] : memref<8x1xf32, #tpu.memory_space<vmem>>, vector<8x1xf32>
    %c17_i32 = arith.constant 17 : i32
    %57 = tpu.dynamic_rotate %50 by %c17_i32 dim 1 : vector<8x256xf32>, i32 -> vector<8x256xf32>
    %58 = vector.broadcast %1 : vector<1x256xf32> to vector<8x256xf32>
    %59 = arith.mulf %58, %57 : vector<8x256xf32>
    %c16_i32 = arith.constant 16 : i32
    %60 = tpu.dynamic_rotate %50 by %c16_i32 dim 1 : vector<8x256xf32>, i32 -> vector<8x256xf32>
    %61 = vector.broadcast %3 : vector<1x256xf32> to vector<8x256xf32>
    %62 = arith.mulf %61, %60 : vector<8x256xf32>
    %c15_i32 = arith.constant 15 : i32
    %63 = tpu.dynamic_rotate %50 by %c15_i32 dim 1 : vector<8x256xf32>, i32 -> vector<8x256xf32>
    %64 = vector.broadcast %5 : vector<1x256xf32> to vector<8x256xf32>
    %65 = arith.mulf %64, %63 : vector<8x256xf32>
    %c1_i32 = arith.constant 1 : i32
    %66 = tpu.dynamic_rotate %50 by %c1_i32 dim 1 : vector<8x256xf32>, i32 -> vector<8x256xf32>
    %67 = vector.broadcast %7 : vector<1x256xf32> to vector<8x256xf32>
    %68 = arith.mulf %67, %66 : vector<8x256xf32>
    %c255_i32 = arith.constant 255 : i32
    %69 = tpu.dynamic_rotate %50 by %c255_i32 dim 1 : vector<8x256xf32>, i32 -> vector<8x256xf32>
    %70 = vector.broadcast %9 : vector<1x256xf32> to vector<8x256xf32>
    %71 = arith.mulf %70, %69 : vector<8x256xf32>
    %c241_i32 = arith.constant 241 : i32
    %72 = tpu.dynamic_rotate %50 by %c241_i32 dim 1 : vector<8x256xf32>, i32 -> vector<8x256xf32>
    %73 = vector.broadcast %11 : vector<1x256xf32> to vector<8x256xf32>
    %74 = arith.mulf %73, %72 : vector<8x256xf32>
    %c240_i32 = arith.constant 240 : i32
    %75 = tpu.dynamic_rotate %50 by %c240_i32 dim 1 : vector<8x256xf32>, i32 -> vector<8x256xf32>
    %76 = vector.broadcast %13 : vector<1x256xf32> to vector<8x256xf32>
    %77 = arith.mulf %76, %75 : vector<8x256xf32>
    %c239_i32 = arith.constant 239 : i32
    %78 = tpu.dynamic_rotate %50 by %c239_i32 dim 1 : vector<8x256xf32>, i32 -> vector<8x256xf32>
    %79 = vector.broadcast %15 : vector<1x256xf32> to vector<8x256xf32>
    %80 = arith.mulf %79, %78 : vector<8x256xf32>
    %81 = tpu.concatenate %59, %62, %65, %68, %50, %71, %74, %77, %80 in 0 : vector<8x256xf32>, vector<8x256xf32>, vector<8x256xf32>, vector<8x256xf32>, vector<8x256xf32>, vector<8x256xf32>, vector<8x256xf32>, vector<8x256xf32>, vector<8x256xf32> -> vector<72x256xf32>
    %cst_36 = arith.constant dense<0.000000e+00> : vector<8x256xf32>
    %82 = tpu.matmul %55, %81, %cst_36 {dimension_numbers = #tpu.dot_dimension_numbers<[1], [0], [0], [1], [0, 0, 1, 1], [], []>} : vector<8x72xf32>, vector<72x256xf32>, vector<8x256xf32> -> vector<8x256xf32>
    %83 = vector.broadcast %56 : vector<8x1xf32> to vector<8x256xf32>
    %84 = arith.addf %82, %83 : vector<8x256xf32>
    %c17_i32_37 = arith.constant 17 : i32
    %85 = tpu.dynamic_rotate %54 by %c17_i32_37 dim 1 : vector<8x256xf32>, i32 -> vector<8x256xf32>
    %86 = vector.broadcast %1 : vector<1x256xf32> to vector<8x256xf32>
    %87 = arith.mulf %86, %85 : vector<8x256xf32>
    %c16_i32_38 = arith.constant 16 : i32
    %88 = tpu.dynamic_rotate %54 by %c16_i32_38 dim 1 : vector<8x256xf32>, i32 -> vector<8x256xf32>
    %89 = vector.broadcast %3 : vector<1x256xf32> to vector<8x256xf32>
    %90 = arith.mulf %89, %88 : vector<8x256xf32>
    %c15_i32_39 = arith.constant 15 : i32
    %91 = tpu.dynamic_rotate %54 by %c15_i32_39 dim 1 : vector<8x256xf32>, i32 -> vector<8x256xf32>
    %92 = vector.broadcast %5 : vector<1x256xf32> to vector<8x256xf32>
    %93 = arith.mulf %92, %91 : vector<8x256xf32>
    %c1_i32_40 = arith.constant 1 : i32
    %94 = tpu.dynamic_rotate %54 by %c1_i32_40 dim 1 : vector<8x256xf32>, i32 -> vector<8x256xf32>
    %95 = vector.broadcast %7 : vector<1x256xf32> to vector<8x256xf32>
    %96 = arith.mulf %95, %94 : vector<8x256xf32>
    %c255_i32_41 = arith.constant 255 : i32
    %97 = tpu.dynamic_rotate %54 by %c255_i32_41 dim 1 : vector<8x256xf32>, i32 -> vector<8x256xf32>
    %98 = vector.broadcast %9 : vector<1x256xf32> to vector<8x256xf32>
    %99 = arith.mulf %98, %97 : vector<8x256xf32>
    %c241_i32_42 = arith.constant 241 : i32
    %100 = tpu.dynamic_rotate %54 by %c241_i32_42 dim 1 : vector<8x256xf32>, i32 -> vector<8x256xf32>
    %101 = vector.broadcast %11 : vector<1x256xf32> to vector<8x256xf32>
    %102 = arith.mulf %101, %100 : vector<8x256xf32>
    %c240_i32_43 = arith.constant 240 : i32
    %103 = tpu.dynamic_rotate %54 by %c240_i32_43 dim 1 : vector<8x256xf32>, i32 -> vector<8x256xf32>
    %104 = vector.broadcast %13 : vector<1x256xf32> to vector<8x256xf32>
    %105 = arith.mulf %104, %103 : vector<8x256xf32>
    %c239_i32_44 = arith.constant 239 : i32
    %106 = tpu.dynamic_rotate %54 by %c239_i32_44 dim 1 : vector<8x256xf32>, i32 -> vector<8x256xf32>
    %107 = vector.broadcast %15 : vector<1x256xf32> to vector<8x256xf32>
    %108 = arith.mulf %107, %106 : vector<8x256xf32>
    %109 = tpu.concatenate %87, %90, %93, %96, %54, %99, %102, %105, %108 in 0 : vector<8x256xf32>, vector<8x256xf32>, vector<8x256xf32>, vector<8x256xf32>, vector<8x256xf32>, vector<8x256xf32>, vector<8x256xf32>, vector<8x256xf32>, vector<8x256xf32> -> vector<72x256xf32>
    %cst_45 = arith.constant dense<0.000000e+00> : vector<8x256xf32>
    %110 = tpu.matmul %55, %109, %cst_45 {dimension_numbers = #tpu.dot_dimension_numbers<[1], [0], [0], [1], [0, 0, 1, 1], [], []>} : vector<8x72xf32>, vector<72x256xf32>, vector<8x256xf32> -> vector<8x256xf32>
    %111 = vector.broadcast %56 : vector<8x1xf32> to vector<8x256xf32>
    %112 = arith.addf %110, %111 : vector<8x256xf32>
    %cst_46 = arith.constant dense<0.000000e+00> : vector<8xf32>
    %113 = vector.multi_reduction <add>, %84, %cst_46 [1] : vector<8x256xf32> to vector<8xf32>
    %114 = vector.shape_cast %113 : vector<8xf32> to vector<8x1xf32>
    %cst_47 = arith.constant 0.000000e+00 : f32
    %115 = vector.broadcast %cst_47 : f32 to vector<8x1xf32>
    %116 = arith.addf %115, %114 : vector<8x1xf32>
    %cst_48 = arith.constant dense<0.000000e+00> : vector<8xf32>
    %117 = vector.multi_reduction <add>, %112, %cst_48 [1] : vector<8x256xf32> to vector<8xf32>
    %118 = vector.shape_cast %117 : vector<8xf32> to vector<8x1xf32>
    %119 = arith.addf %116, %118 : vector<8x1xf32>
    %cst_49 = arith.constant 0.001953125 : f32
    %120 = vector.broadcast %cst_49 : f32 to vector<8x1xf32>
    %121 = arith.mulf %119, %120 : vector<8x1xf32>
    %122 = vector.broadcast %121 : vector<8x1xf32> to vector<8x256xf32>
    %123 = arith.subf %84, %122 : vector<8x256xf32>
    %124 = vector.broadcast %121 : vector<8x1xf32> to vector<8x256xf32>
    %125 = arith.subf %112, %124 : vector<8x256xf32>
    %126 = arith.mulf %123, %123 : vector<8x256xf32>
    %cst_50 = arith.constant dense<0.000000e+00> : vector<8xf32>
    %127 = vector.multi_reduction <add>, %126, %cst_50 [1] : vector<8x256xf32> to vector<8xf32>
    %128 = vector.shape_cast %127 : vector<8xf32> to vector<8x1xf32>
    %cst_51 = arith.constant 0.000000e+00 : f32
    %129 = vector.broadcast %cst_51 : f32 to vector<8x1xf32>
    %130 = arith.addf %129, %128 : vector<8x1xf32>
    %131 = arith.mulf %125, %125 : vector<8x256xf32>
    %cst_52 = arith.constant dense<0.000000e+00> : vector<8xf32>
    %132 = vector.multi_reduction <add>, %131, %cst_52 [1] : vector<8x256xf32> to vector<8xf32>
    %133 = vector.shape_cast %132 : vector<8xf32> to vector<8x1xf32>
    %134 = arith.addf %130, %133 : vector<8x1xf32>
    %cst_53 = arith.constant 0.001953125 : f32
    %135 = vector.broadcast %cst_53 : f32 to vector<8x1xf32>
    %136 = arith.mulf %134, %135 : vector<8x1xf32>
    %cst_54 = arith.constant 9.99999974E-6 : f32
    %137 = vector.broadcast %cst_54 : f32 to vector<8x1xf32>
    %138 = arith.addf %136, %137 : vector<8x1xf32>
    %139 = math.rsqrt %138 : vector<8x1xf32>
    %140 = vector.broadcast %139 : vector<8x1xf32> to vector<8x256xf32>
    %141 = arith.mulf %123, %140 : vector<8x256xf32>
    %cst_55 = arith.constant 0.000000e+00 : f32
    %142 = vector.broadcast %cst_55 : f32 to vector<8x256xf32>
    %143 = arith.maximumf %141, %142 : vector<8x256xf32>
    %144 = vector.broadcast %139 : vector<8x1xf32> to vector<8x256xf32>
    %145 = arith.mulf %125, %144 : vector<8x256xf32>
    %cst_56 = arith.constant 0.000000e+00 : f32
    %146 = vector.broadcast %cst_56 : f32 to vector<8x256xf32>
    %147 = arith.maximumf %145, %146 : vector<8x256xf32>
    %c0_57 = arith.constant 0 : index
    %c0_58 = arith.constant 0 : index
    %148 = vector.load %arg4[%c0_57, %c0_58] : memref<8x80xf32, #tpu.memory_space<vmem>>, vector<8x80xf32>
    %c0_59 = arith.constant 0 : index
    %c0_60 = arith.constant 0 : index
    %149 = vector.load %arg5[%c0_59, %c0_60] : memref<8x1xf32, #tpu.memory_space<vmem>>, vector<8x1xf32>
    %c17_i32_61 = arith.constant 17 : i32
    %150 = tpu.dynamic_rotate %143 by %c17_i32_61 dim 1 : vector<8x256xf32>, i32 -> vector<8x256xf32>
    %151 = vector.broadcast %1 : vector<1x256xf32> to vector<8x256xf32>
    %152 = arith.mulf %151, %150 : vector<8x256xf32>
    %c16_i32_62 = arith.constant 16 : i32
    %153 = tpu.dynamic_rotate %143 by %c16_i32_62 dim 1 : vector<8x256xf32>, i32 -> vector<8x256xf32>
    %154 = vector.broadcast %3 : vector<1x256xf32> to vector<8x256xf32>
    %155 = arith.mulf %154, %153 : vector<8x256xf32>
    %c15_i32_63 = arith.constant 15 : i32
    %156 = tpu.dynamic_rotate %143 by %c15_i32_63 dim 1 : vector<8x256xf32>, i32 -> vector<8x256xf32>
    %157 = vector.broadcast %5 : vector<1x256xf32> to vector<8x256xf32>
    %158 = arith.mulf %157, %156 : vector<8x256xf32>
    %c1_i32_64 = arith.constant 1 : i32
    %159 = tpu.dynamic_rotate %143 by %c1_i32_64 dim 1 : vector<8x256xf32>, i32 -> vector<8x256xf32>
    %160 = vector.broadcast %7 : vector<1x256xf32> to vector<8x256xf32>
    %161 = arith.mulf %160, %159 : vector<8x256xf32>
    %c255_i32_65 = arith.constant 255 : i32
    %162 = tpu.dynamic_rotate %143 by %c255_i32_65 dim 1 : vector<8x256xf32>, i32 -> vector<8x256xf32>
    %163 = vector.broadcast %9 : vector<1x256xf32> to vector<8x256xf32>
    %164 = arith.mulf %163, %162 : vector<8x256xf32>
    %c241_i32_66 = arith.constant 241 : i32
    %165 = tpu.dynamic_rotate %143 by %c241_i32_66 dim 1 : vector<8x256xf32>, i32 -> vector<8x256xf32>
    %166 = vector.broadcast %11 : vector<1x256xf32> to vector<8x256xf32>
    %167 = arith.mulf %166, %165 : vector<8x256xf32>
    %c240_i32_67 = arith.constant 240 : i32
    %168 = tpu.dynamic_rotate %143 by %c240_i32_67 dim 1 : vector<8x256xf32>, i32 -> vector<8x256xf32>
    %169 = vector.broadcast %13 : vector<1x256xf32> to vector<8x256xf32>
    %170 = arith.mulf %169, %168 : vector<8x256xf32>
    %c239_i32_68 = arith.constant 239 : i32
    %171 = tpu.dynamic_rotate %143 by %c239_i32_68 dim 1 : vector<8x256xf32>, i32 -> vector<8x256xf32>
    %172 = vector.broadcast %15 : vector<1x256xf32> to vector<8x256xf32>
    %173 = arith.mulf %172, %171 : vector<8x256xf32>
    %174 = tpu.concatenate %152, %155, %158, %161, %143, %164, %167, %170, %173 in 0 : vector<8x256xf32>, vector<8x256xf32>, vector<8x256xf32>, vector<8x256xf32>, vector<8x256xf32>, vector<8x256xf32>, vector<8x256xf32>, vector<8x256xf32>, vector<8x256xf32> -> vector<72x256xf32>
    %175 = tpu.concatenate %174, %17 in 0 : vector<72x256xf32>, vector<8x256xf32> -> vector<80x256xf32>
    %cst_69 = arith.constant dense<0.000000e+00> : vector<8x256xf32>
    %176 = tpu.matmul %148, %175, %cst_69 {dimension_numbers = #tpu.dot_dimension_numbers<[1], [0], [0], [1], [0, 0, 1, 1], [], []>} : vector<8x80xf32>, vector<80x256xf32>, vector<8x256xf32> -> vector<8x256xf32>
    %177 = vector.broadcast %149 : vector<8x1xf32> to vector<8x256xf32>
    %178 = arith.addf %176, %177 : vector<8x256xf32>
    %c0_70 = arith.constant 0 : index
    %c0_71 = arith.constant 0 : index
    %c0_72 = arith.constant 0 : index
    %179 = vector.load %arg6[%c0_70, %c0_71, %c0_72] : memref<2x8x256xf32, #tpu.memory_space<vmem>>, vector<1x8x256xf32>
    %180 = vector.shape_cast %179 : vector<1x8x256xf32> to vector<8x256xf32>
    %181 = vector.shape_cast %178 : vector<8x256xf32> to vector<1x8x256xf32>
    tpu.vector_store %arg6[%c0_70, %c0_71, %c0_72], %181 {strides = array<i32>} : memref<2x8x256xf32, #tpu.memory_space<vmem>>, vector<1x8x256xf32>,
    %c17_i32_73 = arith.constant 17 : i32
    %182 = tpu.dynamic_rotate %147 by %c17_i32_73 dim 1 : vector<8x256xf32>, i32 -> vector<8x256xf32>
    %183 = vector.broadcast %1 : vector<1x256xf32> to vector<8x256xf32>
    %184 = arith.mulf %183, %182 : vector<8x256xf32>
    %c16_i32_74 = arith.constant 16 : i32
    %185 = tpu.dynamic_rotate %147 by %c16_i32_74 dim 1 : vector<8x256xf32>, i32 -> vector<8x256xf32>
    %186 = vector.broadcast %3 : vector<1x256xf32> to vector<8x256xf32>
    %187 = arith.mulf %186, %185 : vector<8x256xf32>
    %c15_i32_75 = arith.constant 15 : i32
    %188 = tpu.dynamic_rotate %147 by %c15_i32_75 dim 1 : vector<8x256xf32>, i32 -> vector<8x256xf32>
    %189 = vector.broadcast %5 : vector<1x256xf32> to vector<8x256xf32>
    %190 = arith.mulf %189, %188 : vector<8x256xf32>
    %c1_i32_76 = arith.constant 1 : i32
    %191 = tpu.dynamic_rotate %147 by %c1_i32_76 dim 1 : vector<8x256xf32>, i32 -> vector<8x256xf32>
    %192 = vector.broadcast %7 : vector<1x256xf32> to vector<8x256xf32>
    %193 = arith.mulf %192, %191 : vector<8x256xf32>
    %c255_i32_77 = arith.constant 255 : i32
    %194 = tpu.dynamic_rotate %147 by %c255_i32_77 dim 1 : vector<8x256xf32>, i32 -> vector<8x256xf32>
    %195 = vector.broadcast %9 : vector<1x256xf32> to vector<8x256xf32>
    %196 = arith.mulf %195, %194 : vector<8x256xf32>
    %c241_i32_78 = arith.constant 241 : i32
    %197 = tpu.dynamic_rotate %147 by %c241_i32_78 dim 1 : vector<8x256xf32>, i32 -> vector<8x256xf32>
    %198 = vector.broadcast %11 : vector<1x256xf32> to vector<8x256xf32>
    %199 = arith.mulf %198, %197 : vector<8x256xf32>
    %c240_i32_79 = arith.constant 240 : i32
    %200 = tpu.dynamic_rotate %147 by %c240_i32_79 dim 1 : vector<8x256xf32>, i32 -> vector<8x256xf32>
    %201 = vector.broadcast %13 : vector<1x256xf32> to vector<8x256xf32>
    %202 = arith.mulf %201, %200 : vector<8x256xf32>
    %c239_i32_80 = arith.constant 239 : i32
    %203 = tpu.dynamic_rotate %147 by %c239_i32_80 dim 1 : vector<8x256xf32>, i32 -> vector<8x256xf32>
    %204 = vector.broadcast %15 : vector<1x256xf32> to vector<8x256xf32>
    %205 = arith.mulf %204, %203 : vector<8x256xf32>
    %206 = tpu.concatenate %184, %187, %190, %193, %147, %196, %199, %202, %205 in 0 : vector<8x256xf32>, vector<8x256xf32>, vector<8x256xf32>, vector<8x256xf32>, vector<8x256xf32>, vector<8x256xf32>, vector<8x256xf32>, vector<8x256xf32>, vector<8x256xf32> -> vector<72x256xf32>
    %207 = tpu.concatenate %206, %19 in 0 : vector<72x256xf32>, vector<8x256xf32> -> vector<80x256xf32>
    %cst_81 = arith.constant dense<0.000000e+00> : vector<8x256xf32>
    %208 = tpu.matmul %148, %207, %cst_81 {dimension_numbers = #tpu.dot_dimension_numbers<[1], [0], [0], [1], [0, 0, 1, 1], [], []>} : vector<8x80xf32>, vector<80x256xf32>, vector<8x256xf32> -> vector<8x256xf32>
    %209 = vector.broadcast %149 : vector<8x1xf32> to vector<8x256xf32>
    %210 = arith.addf %208, %209 : vector<8x256xf32>
    %c1_82 = arith.constant 1 : index
    %c0_83 = arith.constant 0 : index
    %c0_84 = arith.constant 0 : index
    %211 = vector.load %arg6[%c1_82, %c0_83, %c0_84] : memref<2x8x256xf32, #tpu.memory_space<vmem>>, vector<1x8x256xf32>
    %212 = vector.shape_cast %211 : vector<1x8x256xf32> to vector<8x256xf32>
    %213 = vector.shape_cast %210 : vector<8x256xf32> to vector<1x8x256xf32>
    tpu.vector_store %arg6[%c1_82, %c0_83, %c0_84], %213 {strides = array<i32>} : memref<2x8x256xf32, #tpu.memory_space<vmem>>, vector<1x8x256xf32>,
    return
  }
}

</mosaic_0001>

<llo_original>
// kernel: tpu_custom_call.1
$region0: #{tpu_custom_call.1}
  #allocation0 [shape = 'u32[]', space=smem, size = 0x4, offset = 0x4, fixed_abs, tag = 'smem constant byte address 0x4 - core index']
  #allocation1 [shape = 'u32[144,128]{1,0:T(1,128)}', space=vmem, size = 0x12000, scoped, tag = 'internal scratch']
  %s0 = inlined_call_operand.hbm [shape: f32[2,8,256], index: 0, kind: input, shape index: {}]
  %s1 = inlined_call_operand.vmem [shape: f32[9,1,256], index: 1, kind: input, shape index: {}]
  %s2 = inlined_call_operand.hbm [shape: f32[8,72], index: 2, kind: input, shape index: {}]
  %s3 = inlined_call_operand.vmem [shape: f32[8,1], index: 3, kind: input, shape index: {}]
  %s4 = inlined_call_operand.vmem [shape: f32[8,80], index: 4, kind: input, shape index: {}]
  %s5 = inlined_call_operand.vmem [shape: f32[8,1], index: 5, kind: input, shape index: {}]
  %s6 = inlined_call_operand.hbm [shape: f32[2,8,256], index: 6, kind: output, shape index: {}]
  %s7 = sld [smem:[#allocation0]]
  $region42: #{tpu_custom_call.1} parent=0
    _
  %s9 = ssub.s32 1, %s7
  %s10 = scalar_select 0, %s9, %s7
  $region1: #{tpu_custom_call.1} parent=0
    #allocation2 [shape = 'u8[16384]{0}', space=vmem, size = 0x4000, scoped, tag = 'input window, operand 0, single buffered']
    #allocation3 [shape = 's32[1]{0}', space=sflag, size = 0x4, scoped, tag = 'scoped memory for tpu_custom_call.1']
    #allocation4 [shape = 's32[1]{0}', space=sflag, size = 0x4, scoped, tag = 'scoped memory for tpu_custom_call.1']
    #allocation5 [shape = 'u8[4096]{0}', space=vmem, size = 0x1000, scoped, tag = 'input window, operand 2, single buffered']
    #allocation6 [shape = 's32[1]{0}', space=sflag, size = 0x4, scoped, tag = 'scoped memory for tpu_custom_call.1']
    #allocation7 [shape = 'u8[16384]{0}', space=vmem, size = 0x4000, scoped, tag = 'output window, operand 0, single buffered']
    %11 = vsyncpa [#allocation3], 0
    %12 = vsyncpa [#allocation6], 0
    %13 = vsyncpa [#allocation4], 0
    // Predicated region
    $region2: #{tpu_custom_call.1} parent=1 // pred_check
      _
    $region3: #{tpu_custom_call.1} parent=1 // pred_check_branch
      %15 = sbr.rel (0) target = $region5
    $region4: #{tpu_custom_call.1} parent=1 // pred_region
      %s17 = ssub.s32 512, 512
      %18 = vsyncadd [#allocation3], %s17
      %s19 = sshll.u32 [#allocation2], 4
      %s20 = int_to_ptr.vmem [resolvable:$true] %s19
      %25 = dma.hbm_to_vmem [thread:$0]  %s0, 512, %s20, [#allocation3], 256, 256, 16
    $region5: #{tpu_custom_call.1} parent=1 // pred_fallthru
      _
    // Predicated region
    $region6: #{tpu_custom_call.1} parent=1 // pred_check
      _
    $region7: #{tpu_custom_call.1} parent=1 // pred_check_branch
      %27 = sbr.rel (0) target = $region9
    $region8: #{tpu_custom_call.1} parent=1 // pred_region
      _
    $region9: #{tpu_custom_call.1} parent=1 // pred_fallthru
      _
    // Predicated region
    $region10: #{tpu_custom_call.1} parent=1 // pred_check
      _
    $region11: #{tpu_custom_call.1} parent=1 // pred_check_branch
      %29 = sbr.rel (0) target = $region13
    $region12: #{tpu_custom_call.1} parent=1 // pred_region
      %s31 = ssub.s32 128, 128
      %32 = vsyncadd [#allocation6], %s31
      %s34 = sshll.u32 [#allocation5], 4
      %s35 = int_to_ptr.vmem [resolvable:$true] %s34
      %37 = dma.hbm_to_vmem [thread:$0]  %s2, 128, %s35, [#allocation6]
    $region13: #{tpu_custom_call.1} parent=1 // pred_fallthru
      _
    // Predicated region
    $region14: #{tpu_custom_call.1} parent=1 // pred_check
      _
    $region15: #{tpu_custom_call.1} parent=1 // pred_check_branch
      %39 = sbr.rel (0) target = $region17
    $region16: #{tpu_custom_call.1} parent=1 // pred_region
      _
    $region17: #{tpu_custom_call.1} parent=1 // pred_fallthru
      _
    // Predicated region
    $region18: #{tpu_custom_call.1} parent=1 // pred_check
      _
    $region19: #{tpu_custom_call.1} parent=1 // pred_check_branch
      %41 = sbr.rel (0) target = $region21
    $region20: #{tpu_custom_call.1} parent=1 // pred_region
      _
    $region21: #{tpu_custom_call.1} parent=1 // pred_fallthru
      _
    // Predicated region
    $region22: #{tpu_custom_call.1} parent=1 // pred_check
      _
    $region23: #{tpu_custom_call.1} parent=1 // pred_check_branch
      %43 = sbr.rel (0) target = $region25
    $region24: #{tpu_custom_call.1} parent=1 // pred_region
      _
    $region25: #{tpu_custom_call.1} parent=1 // pred_fallthru
      _
    // Predicated region
    $region26: #{tpu_custom_call.1} parent=1 // pred_check
      _
    $region27: #{tpu_custom_call.1} parent=1 // pred_check_branch
      %45 = sbr.rel (0) target = $region29
    $region28: #{tpu_custom_call.1} parent=1 // pred_region
      %46 = dma.done [#allocation3], 512
    $region29: #{tpu_custom_call.1} parent=1 // pred_fallthru
      _
    // Predicated region
    $region30: #{tpu_custom_call.1} parent=1 // pred_check
      _
    $region31: #{tpu_custom_call.1} parent=1 // pred_check_branch
      %48 = sbr.rel (0) target = $region33
    $region32: #{tpu_custom_call.1} parent=1 // pred_region
      %49 = dma.done [#allocation6], 128
    $region33: #{tpu_custom_call.1} parent=1 // pred_fallthru
      _
    %v50 = vld [vmem:[%s1] sm:$0x3]
    %s51 = scalar_lea.vmem %s1, 2
    %v52 = vld [vmem:[%s51] sm:$0x3]
    %s53 = scalar_lea.vmem %s1, 4
    %v54 = vld [vmem:[%s53] sm:$0x3]
    %s55 = scalar_lea.vmem %s1, 6
    %v56 = vld [vmem:[%s55] sm:$0x3]
    %s57 = scalar_lea.vmem %s1, 10
    %v58 = vld [vmem:[%s57] sm:$0x3]
    %s59 = scalar_lea.vmem %s1, 12
    %v60 = vld [vmem:[%s59] sm:$0x3]
    %s61 = scalar_lea.vmem %s1, 14
    %v62 = vld [vmem:[%s61] sm:$0x3]
    %s63 = scalar_lea.vmem %s1, 16
    %v64 = vld [vmem:[%s63] sm:$0x3]
    %v65 = vld [vmem:[#allocation2] sm:$0xff]
    %v66 = vld [vmem:[#allocation2 + $0x8] sm:$0xff]
    %s67 = scalar_lea.vmem [#allocation2], 16
    %v68 = vld [vmem:[%s67] sm:$0xff]
    %v69 = vld [vmem:[%s67 + $0x8] sm:$0xff]
    %v70 = vadd.f32 %v65, %v66
    %71 = vadd.xlane.f32.xlu0 %v70
    %v72 = vpop.xlane.xlu0 %71
    %v73 = vadd.f32 %v72, 0.0
    %v74 = vadd.f32 %v68, %v69
    %75 = vadd.xlane.f32.xlu0 %v74
    %v76 = vpop.xlane.xlu0 %75
    %v77 = vadd.f32 %v73, %v76
    %v78 = vmul.f32 %v77, 0.001953125
    %v79 = vsub.f32 %v65, %v78
    %v80 = vsub.f32 %v66, %v78
    %v81 = vsub.f32 %v68, %v78
    %v82 = vsub.f32 %v69, %v78
    %v83 = vmul.f32 %v79, %v79
    %v84 = vmul.f32 %v80, %v80
    %v85 = vadd.f32 %v83, %v84
    %86 = vadd.xlane.f32.xlu0 %v85
    %v87 = vpop.xlane.xlu0 %86
    %v88 = vadd.f32 %v87, 0.0
    %v89 = vmul.f32 %v81, %v81
    %v90 = vmul.f32 %v82, %v82
    %v91 = vadd.f32 %v89, %v90
    %92 = vadd.xlane.f32.xlu0 %v91
    %v93 = vpop.xlane.xlu0 %92
    %v94 = vadd.f32 %v88, %v93
    %v95 = vmul.f32 %v94, 0.001953125
    %v96 = vadd.f32 %v95, 1e-05
    %v97 = vrsqrt.pop %v96
    %v98 = vmul.f32 %v79, %v97
    %v99 = vmul.f32 %v80, %v97
    %v100 = vmax.f32 %v98, 0.0
    %v101 = vmax.f32 %v99, 0.0
    %v102 = vmul.f32 %v81, %v97
    %v103 = vmul.f32 %v82, %v97
    %v104 = vmax.f32 %v102, 0.0
    %v105 = vmax.f32 %v103, 0.0
    %v106 = vld [vmem:[#allocation5] sm:$0xff]
    %v107 = vld [vmem:[%s3] sm:$0xff]
    %108 = vrot.lane.b32.xlu0 %v100, 17
    %v109 = vpop.permute.xlu0 %108
    %110 = vrot.lane.b32.xlu0 %v101, 17
    %v111 = vpop.permute.xlu0 %110
    %v112 = vlaneseq
    %v113 = vand.u32 %v112, 127
    %vm114 = vcmp.lt.s32.totalorder %v113, 17
    %v115 = vsel %vm114, %v109, %v111
    %v116 = vsel %vm114, %v111, %v109
    %v118 = vlaneseq
    %v119 = vshrl.u32 %v118, 7
    %v120 = vsub.s32 0, %v119
    %v121 = vrot.slane %v50, %v120
    %v122 = vlaneseq
    %v123 = vshrl.u32 %v122, 7
    %v124 = vsub.s32 1, %v123
    %v125 = vrot.slane %v50, %v124
    %v128 = vmul.f32 %v121, %v116
    %v129 = vmul.f32 %v125, %v115
    %130 = vrot.lane.b32.xlu0 %v100, 16
    %v131 = vpop.permute.xlu0 %130
    %132 = vrot.lane.b32.xlu0 %v101, 16
    %v133 = vpop.permute.xlu0 %132
    %vm134 = vcmp.lt.s32.totalorder %v113, 16
    %v135 = vsel %vm134, %v131, %v133
    %v136 = vsel %vm134, %v133, %v131
    %v138 = vlaneseq
    %v139 = vshrl.u32 %v138, 7
    %v140 = vsub.s32 0, %v139
    %v141 = vrot.slane %v52, %v140
    %v142 = vlaneseq
    %v143 = vshrl.u32 %v142, 7
    %v144 = vsub.s32 1, %v143
    %v145 = vrot.slane %v52, %v144
    %v148 = vmul.f32 %v141, %v136
    %v149 = vmul.f32 %v145, %v135
    %150 = vrot.lane.b32.xlu0 %v100, 15
    %v151 = vpop.permute.xlu0 %150
    %152 = vrot.lane.b32.xlu0 %v101, 15
    %v153 = vpop.permute.xlu0 %152
    %vm154 = vcmp.lt.s32.totalorder %v113, 15
    %v155 = vsel %vm154, %v151, %v153
    %v156 = vsel %vm154, %v153, %v151
    %v158 = vlaneseq
    %v159 = vshrl.u32 %v158, 7
    %v160 = vsub.s32 0, %v159
    %v161 = vrot.slane %v54, %v160
    %v162 = vlaneseq
    %v163 = vshrl.u32 %v162, 7
    %v164 = vsub.s32 1, %v163
    %v165 = vrot.slane %v54, %v164
    %v168 = vmul.f32 %v161, %v156
    %v169 = vmul.f32 %v165, %v155
    %170 = vrot.lane.b32.xlu0 %v100, 1
    %v171 = vpop.permute.xlu0 %170
    %172 = vrot.lane.b32.xlu0 %v101, 1
    %v173 = vpop.permute.xlu0 %172
    %vm174 = vcmp.lt.s32.totalorder %v113, 1
    %v175 = vsel %vm174, %v171, %v173
    %v176 = vsel %vm174, %v173, %v171
    %v178 = vlaneseq
    %v179 = vshrl.u32 %v178, 7
    %v180 = vsub.s32 0, %v179
    %v181 = vrot.slane %v56, %v180
    %v182 = vlaneseq
    %v183 = vshrl.u32 %v182, 7
    %v184 = vsub.s32 1, %v183
    %v185 = vrot.slane %v56, %v184
    %v188 = vmul.f32 %v181, %v176
    %v189 = vmul.f32 %v185, %v175
    %190 = vrot.lane.b32.xlu0 %v100, 127
    %v191 = vpop.permute.xlu0 %190
    %192 = vrot.lane.b32.xlu0 %v101, 127
    %v193 = vpop.permute.xlu0 %192
    %vm194 = vcmp.lt.s32.totalorder %v113, 127
    %v195 = vsel %vm194, %v191, %v193
    %v196 = vsel %vm194, %v193, %v191
    %v198 = vlaneseq
    %v199 = vshrl.u32 %v198, 7
    %v200 = vsub.s32 0, %v199
    %v201 = vrot.slane %v58, %v200
    %v202 = vlaneseq
    %v203 = vshrl.u32 %v202, 7
    %v204 = vsub.s32 1, %v203
    %v205 = vrot.slane %v58, %v204
    %v208 = vmul.f32 %v201, %v195
    %v209 = vmul.f32 %v205, %v196
    %210 = vrot.lane.b32.xlu0 %v100, 113
    %v211 = vpop.permute.xlu0 %210
    %212 = vrot.lane.b32.xlu0 %v101, 113
    %v213 = vpop.permute.xlu0 %212
    %vm214 = vcmp.lt.s32.totalorder %v113, 113
    %v215 = vsel %vm214, %v211, %v213
    %v216 = vsel %vm214, %v213, %v211
    %v218 = vlaneseq
    %v219 = vshrl.u32 %v218, 7
    %v220 = vsub.s32 0, %v219
    %v221 = vrot.slane %v60, %v220
    %v222 = vlaneseq
    %v223 = vshrl.u32 %v222, 7
    %v224 = vsub.s32 1, %v223
    %v225 = vrot.slane %v60, %v224
    %v228 = vmul.f32 %v221, %v215
    %v229 = vmul.f32 %v225, %v216
    %230 = vrot.lane.b32.xlu0 %v100, 112
    %v231 = vpop.permute.xlu0 %230
    %232 = vrot.lane.b32.xlu0 %v101, 112
    %v233 = vpop.permute.xlu0 %232
    %vm234 = vcmp.lt.s32.totalorder %v113, 112
    %v235 = vsel %vm234, %v231, %v233
    %v236 = vsel %vm234, %v233, %v231
    %v238 = vlaneseq
    %v239 = vshrl.u32 %v238, 7
    %v240 = vsub.s32 0, %v239
    %v241 = vrot.slane %v62, %v240
    %v242 = vlaneseq
    %v243 = vshrl.u32 %v242, 7
    %v244 = vsub.s32 1, %v243
    %v245 = vrot.slane %v62, %v244
    %v248 = vmul.f32 %v241, %v235
    %v249 = vmul.f32 %v245, %v236
    %250 = vrot.lane.b32.xlu0 %v100, 111
    %v251 = vpop.permute.xlu0 %250
    %252 = vrot.lane.b32.xlu0 %v101, 111
    %v253 = vpop.permute.xlu0 %252
    %vm254 = vcmp.lt.s32.totalorder %v113, 111
    %v255 = vsel %vm254, %v251, %v253
    %v256 = vsel %vm254, %v253, %v251
    %v258 = vlaneseq
    %v259 = vshrl.u32 %v258, 7
    %v260 = vsub.s32 0, %v259
    %v261 = vrot.slane %v64, %v260
    %v262 = vlaneseq
    %v263 = vshrl.u32 %v262, 7
    %v264 = vsub.s32 1, %v263
    %v265 = vrot.slane %v64, %v264
    %v268 = vmul.f32 %v261, %v255
    %v269 = vmul.f32 %v265, %v256
    %271 = vset.pattern.permute.xlu0 0
    %272 = vperm.xlu0 %271, %v107
    %v273 = vpop.permute.xlu0 %272
    %vm275 = vcmask 588800
    %v277 = vsel %vm275, %v106, 0
    %279 = vmatprep.subr.mxu0 %v129
    %280 = vmatpush1.msra.mxu0 %v128
    %281 = vmatprep.subr.mxu0 %v149
    %282 = vmatpush1.msra.mxu0 %v148
    %283 = vmatprep.subr.mxu0 %v169
    %284 = vmatpush1.msra.mxu0 %v168
    %285 = vmatprep.subr.mxu0 %v189
    %286 = vmatpush1.msra.mxu0 %v188
    %287 = vmatprep.subr.mxu0 %v101
    %288 = vmatpush1.msra.mxu0 %v100
    %289 = vmatprep.subr.mxu0 %v209
    %290 = vmatpush1.msra.mxu0 %v208
    %291 = vmatprep.subr.mxu0 %v229
    %292 = vmatpush1.msra.mxu0 %v228
    %293 = vmatprep.subr.mxu0 %v249
    %294 = vmatpush1.msra.mxu0 %v248
    %295 = vmatprep.subr.mxu0 %v269
    %296 = vmatpush1.msra.mxu0 %v268
    %297 = vmatprep.subr.mxu0 0.0
    %298 = vmatpush1.msra.mxu0 0.0
    %299 = vmatprep.subr.mxu0 0.0
    %300 = vmatpush1.msra.mxu0 0.0
    %301 = vmatprep.subr.mxu0 0.0
    %302 = vmatpush1.msra.mxu0 0.0
    %303 = vmatprep.subr.mxu0 0.0
    %304 = vmatpush1.msra.mxu0 0.0
    %305 = vmatprep.subr.mxu0 0.0
    %306 = vmatpush1.msra.mxu0 0.0
    %307 = vmatprep.subr.mxu0 0.0
    %308 = vmatpush1.msra.mxu0 0.0
    %309 = vmatprep.subr.mxu0 0.0
    %310 = vmatpush1.msra.mxu0 0.0
    %311 = vmatprep.subr.mxu0 0.0
    %312 = vmatpush1.msra.mxu0 0.0
    %313 = vmatprep.subr.mxu0 0.0
    %314 = vmatpush1.msra.mxu0 0.0
    %315 = vmatprep.subr.mxu0 0.0
    %316 = vmatpush1.msra.mxu0 0.0
    %317 = vmatprep.subr.mxu0 0.0
    %318 = vmatpush1.msra.mxu0 0.0
    %319 = vmatprep.subr.mxu0 0.0
    %320 = vmatpush1.msra.mxu0 0.0
    %321 = vmatprep.subr.mxu0 0.0
    %322 = vmatpush1.msra.mxu0 0.0
    %323 = vmatprep.subr.mxu0 0.0
    %324 = vmatpush1.msra.mxu0 0.0
    %325 = vmatprep.subr.mxu0 0.0
    %326 = vmatpush1.msra.mxu0 0.0
    %327 = vmatprep.subr.mxu0 0.0
    %328 = vmatpush1.msra.mxu0 0.0
    %329 = vmatprep.subr.mxu0 0.0
    %330 = vmatpush1.msra.mxu0 0.0
    %331 = vmatprep.subr.mxu0 0.0
    %332 = vmatpush1.msra.mxu0 0.0
    %333 = vmatprep.subr.mxu0 0.0
    %334 = vmatpush1.msra.mxu0 0.0
    %335 = vmatprep.subr.mxu0 0.0
    %336 = vmatpush1.msra.mxu0 0.0
    %337 = vmatprep.subr.mxu0 0.0
    %338 = vmatpush1.msra.mxu0 0.0
    %339 = vmatprep.subr.mxu0 0.0
    %340 = vmatpush1.msra.mxu0 0.0
    %341 = vmatprep.subr.mxu0 0.0
    %342 = vmatpush1.msra.mxu0 0.0
    %343 = vmatprep.mubr.f32.mxu0 0.0
    %344 = vmatmul.mubr.f32.gmra.mrb[0].mxu0 %v277
    %v345 = vpop.f32.mrb[0].mxu0
    %v346 = vadd.f32 %v273, %v345
    %v347 = vpop.f32.mrb[0].mxu0
    %v348 = vadd.f32 %v273, %v347
    %349 = vdwg.mxu0
    %350 = vrot.lane.b32.xlu0 %v104, 17
    %v351 = vpop.permute.xlu0 %350
    %352 = vrot.lane.b32.xlu0 %v105, 17
    %v353 = vpop.permute.xlu0 %352
    %v354 = vsel %vm114, %v351, %v353
    %v355 = vsel %vm114, %v353, %v351
    %v356 = vmul.f32 %v121, %v355
    %v357 = vmul.f32 %v125, %v354
    %358 = vrot.lane.b32.xlu0 %v104, 16
    %v359 = vpop.permute.xlu0 %358
    %360 = vrot.lane.b32.xlu0 %v105, 16
    %v361 = vpop.permute.xlu0 %360
    %v362 = vsel %vm134, %v359, %v361
    %v363 = vsel %vm134, %v361, %v359
    %v364 = vmul.f32 %v141, %v363
    %v365 = vmul.f32 %v145, %v362
    %366 = vrot.lane.b32.xlu0 %v104, 15
    %v367 = vpop.permute.xlu0 %366
    %368 = vrot.lane.b32.xlu0 %v105, 15
    %v369 = vpop.permute.xlu0 %368
    %v370 = vsel %vm154, %v367, %v369
    %v371 = vsel %vm154, %v369, %v367
    %v372 = vmul.f32 %v161, %v371
    %v373 = vmul.f32 %v165, %v370
    %374 = vrot.lane.b32.xlu0 %v104, 1
    %v375 = vpop.permute.xlu0 %374
    %376 = vrot.lane.b32.xlu0 %v105, 1
    %v377 = vpop.permute.xlu0 %376
    %v378 = vsel %vm174, %v375, %v377
    %v379 = vsel %vm174, %v377, %v375
    %v380 = vmul.f32 %v181, %v379
    %v381 = vmul.f32 %v185, %v378
    %382 = vrot.lane.b32.xlu0 %v104, 127
    %v383 = vpop.permute.xlu0 %382
    %384 = vrot.lane.b32.xlu0 %v105, 127
    %v385 = vpop.permute.xlu0 %384
    %v386 = vsel %vm194, %v383, %v385
    %v387 = vsel %vm194, %v385, %v383
    %v388 = vmul.f32 %v201, %v386
    %v389 = vmul.f32 %v205, %v387
    %390 = vrot.lane.b32.xlu0 %v104, 113
    %v391 = vpop.permute.xlu0 %390
    %392 = vrot.lane.b32.xlu0 %v105, 113
    %v393 = vpop.permute.xlu0 %392
    %v394 = vsel %vm214, %v391, %v393
    %v395 = vsel %vm214, %v393, %v391
    %v396 = vmul.f32 %v221, %v394
    %v397 = vmul.f32 %v225, %v395
    %398 = vrot.lane.b32.xlu0 %v104, 112
    %v399 = vpop.permute.xlu0 %398
    %400 = vrot.lane.b32.xlu0 %v105, 112
    %v401 = vpop.permute.xlu0 %400
    %v402 = vsel %vm234, %v399, %v401
    %v403 = vsel %vm234, %v401, %v399
    %v404 = vmul.f32 %v241, %v402
    %v405 = vmul.f32 %v245, %v403
    %406 = vrot.lane.b32.xlu0 %v104, 111
    %v407 = vpop.permute.xlu0 %406
    %408 = vrot.lane.b32.xlu0 %v105, 111
    %v409 = vpop.permute.xlu0 %408
    %v410 = vsel %vm254, %v407, %v409
    %v411 = vsel %vm254, %v409, %v407
    %v412 = vmul.f32 %v261, %v410
    %v413 = vmul.f32 %v265, %v411
    %414 = vmatprep.subr.mxu0 %v357
    %415 = vmatpush1.msra.mxu0 %v356
    %416 = vmatprep.subr.mxu0 %v365
    %417 = vmatpush1.msra.mxu0 %v364
    %418 = vmatprep.subr.mxu0 %v373
    %419 = vmatpush1.msra.mxu0 %v372
    %420 = vmatprep.subr.mxu0 %v381
    %421 = vmatpush1.msra.mxu0 %v380
    %422 = vmatprep.subr.mxu0 %v105
    %423 = vmatpush1.msra.mxu0 %v104
    %424 = vmatprep.subr.mxu0 %v389
    %425 = vmatpush1.msra.mxu0 %v388
    %426 = vmatprep.subr.mxu0 %v397
    %427 = vmatpush1.msra.mxu0 %v396
    %428 = vmatprep.subr.mxu0 %v405
    %429 = vmatpush1.msra.mxu0 %v404
    %430 = vmatprep.subr.mxu0 %v413
    %431 = vmatpush1.msra.mxu0 %v412
    %432 = vmatprep.subr.mxu0 0.0
    %433 = vmatpush1.msra.mxu0 0.0
    %434 = vmatprep.subr.mxu0 0.0
    %435 = vmatpush1.msra.mxu0 0.0
    %436 = vmatprep.subr.mxu0 0.0
    %437 = vmatpush1.msra.mxu0 0.0
    %438 = vmatprep.subr.mxu0 0.0
    %439 = vmatpush1.msra.mxu0 0.0
    %440 = vmatprep.subr.mxu0 0.0
    %441 = vmatpush1.msra.mxu0 0.0
    %442 = vmatprep.subr.mxu0 0.0
    %443 = vmatpush1.msra.mxu0 0.0
    %444 = vmatprep.subr.mxu0 0.0
    %445 = vmatpush1.msra.mxu0 0.0
    %446 = vmatprep.subr.mxu0 0.0
    %447 = vmatpush1.msra.mxu0 0.0
    %448 = vmatprep.subr.mxu0 0.0
    %449 = vmatpush1.msra.mxu0 0.0
    %450 = vmatprep.subr.mxu0 0.0
    %451 = vmatpush1.msra.mxu0 0.0
    %452 = vmatprep.subr.mxu0 0.0
    %453 = vmatpush1.msra.mxu0 0.0
    %454 = vmatprep.subr.mxu0 0.0
    %455 = vmatpush1.msra.mxu0 0.0
    %456 = vmatprep.subr.mxu0 0.0
    %457 = vmatpush1.msra.mxu0 0.0
    %458 = vmatprep.subr.mxu0 0.0
    %459 = vmatpush1.msra.mxu0 0.0
    %460 = vmatprep.subr.mxu0 0.0
    %461 = vmatpush1.msra.mxu0 0.0
    %462 = vmatprep.subr.mxu0 0.0
    %463 = vmatpush1.msra.mxu0 0.0
    %464 = vmatprep.subr.mxu0 0.0
    %465 = vmatpush1.msra.mxu0 0.0
    %466 = vmatprep.subr.mxu0 0.0
    %467 = vmatpush1.msra.mxu0 0.0
    %468 = vmatprep.subr.mxu0 0.0
    %469 = vmatpush1.msra.mxu0 0.0
    %470 = vmatprep.subr.mxu0 0.0
    %471 = vmatpush1.msra.mxu0 0.0
    %472 = vmatprep.subr.mxu0 0.0
    %473 = vmatpush1.msra.mxu0 0.0
    %474 = vmatprep.subr.mxu0 0.0
    %475 = vmatpush1.msra.mxu0 0.0
    %476 = vmatprep.subr.mxu0 0.0
    %477 = vmatpush1.msra.mxu0 0.0
    %478 = vmatprep.mubr.f32.mxu0 0.0
    %479 = vmatmul.mubr.f32.gmra.mrb[0].mxu0 %v277
    %v480 = vpop.f32.mrb[0].mxu0
    %v481 = vadd.f32 %v273, %v480
    %v482 = vpop.f32.mrb[0].mxu0
    %v483 = vadd.f32 %v273, %v482
    %484 = vdwg.mxu0
    %v485 = vadd.f32 %v346, %v348
    %486 = vadd.xlane.f32.xlu0 %v485
    %v487 = vpop.xlane.xlu0 %486
    %v488 = vadd.f32 %v487, 0.0
    %v489 = vadd.f32 %v481, %v483
    %490 = vadd.xlane.f32.xlu0 %v489
    %v491 = vpop.xlane.xlu0 %490
    %v492 = vadd.f32 %v488, %v491
    %v493 = vmul.f32 %v492, 0.001953125
    %v494 = vsub.f32 %v346, %v493
    %v495 = vsub.f32 %v348, %v493
    %v496 = vsub.f32 %v481, %v493
    %v497 = vsub.f32 %v483, %v493
    %v498 = vmul.f32 %v494, %v494
    %v499 = vmul.f32 %v495, %v495
    %v500 = vadd.f32 %v498, %v499
    %501 = vadd.xlane.f32.xlu0 %v500
    %v502 = vpop.xlane.xlu0 %501
    %v503 = vadd.f32 %v502, 0.0
    %v504 = vmul.f32 %v496, %v496
    %v505 = vmul.f32 %v497, %v497
    %v506 = vadd.f32 %v504, %v505
    %507 = vadd.xlane.f32.xlu0 %v506
    %v508 = vpop.xlane.xlu0 %507
    %v509 = vadd.f32 %v503, %v508
    %v510 = vmul.f32 %v509, 0.001953125
    %v511 = vadd.f32 %v510, 1e-05
    %v512 = vrsqrt.pop %v511
    %v513 = vmul.f32 %v494, %v512
    %v514 = vmul.f32 %v495, %v512
    %v515 = vmax.f32 %v513, 0.0
    %v516 = vmax.f32 %v514, 0.0
    %v517 = vmul.f32 %v496, %v512
    %v518 = vmul.f32 %v497, %v512
    %v519 = vmax.f32 %v517, 0.0
    %v520 = vmax.f32 %v518, 0.0
    %v521 = vld [vmem:[%s4] sm:$0xff]
    %v522 = vld [vmem:[%s5] sm:$0xff]
    %523 = vrot.lane.b32.xlu0 %v515, 17
    %v524 = vpop.permute.xlu0 %523
    %525 = vrot.lane.b32.xlu0 %v516, 17
    %v526 = vpop.permute.xlu0 %525
    %v527 = vsel %vm114, %v524, %v526
    %v528 = vsel %vm114, %v526, %v524
    %v529 = vmul.f32 %v121, %v528
    %v530 = vmul.f32 %v125, %v527
    %531 = vrot.lane.b32.xlu0 %v515, 16
    %v532 = vpop.permute.xlu0 %531
    %533 = vrot.lane.b32.xlu0 %v516, 16
    %v534 = vpop.permute.xlu0 %533
    %v535 = vsel %vm134, %v532, %v534
    %v536 = vsel %vm134, %v534, %v532
    %v537 = vmul.f32 %v141, %v536
    %v538 = vmul.f32 %v145, %v535
    %539 = vrot.lane.b32.xlu0 %v515, 15
    %v540 = vpop.permute.xlu0 %539
    %541 = vrot.lane.b32.xlu0 %v516, 15
    %v542 = vpop.permute.xlu0 %541
    %v543 = vsel %vm154, %v540, %v542
    %v544 = vsel %vm154, %v542, %v540
    %v545 = vmul.f32 %v161, %v544
    %v546 = vmul.f32 %v165, %v543
    %547 = vrot.lane.b32.xlu0 %v515, 1
    %v548 = vpop.permute.xlu0 %547
    %549 = vrot.lane.b32.xlu0 %v516, 1
    %v550 = vpop.permute.xlu0 %549
    %v551 = vsel %vm174, %v548, %v550
    %v552 = vsel %vm174, %v550, %v548
    %v553 = vmul.f32 %v181, %v552
    %v554 = vmul.f32 %v185, %v551
    %555 = vrot.lane.b32.xlu0 %v515, 127
    %v556 = vpop.permute.xlu0 %555
    %557 = vrot.lane.b32.xlu0 %v516, 127
    %v558 = vpop.permute.xlu0 %557
    %v559 = vsel %vm194, %v556, %v558
    %v560 = vsel %vm194, %v558, %v556
    %v561 = vmul.f32 %v201, %v559
    %v562 = vmul.f32 %v205, %v560
    %563 = vrot.lane.b32.xlu0 %v515, 113
    %v564 = vpop.permute.xlu0 %563
    %565 = vrot.lane.b32.xlu0 %v516, 113
    %v566 = vpop.permute.xlu0 %565
    %v567 = vsel %vm214, %v564, %v566
    %v568 = vsel %vm214, %v566, %v564
    %v569 = vmul.f32 %v221, %v567
    %v570 = vmul.f32 %v225, %v568
    %571 = vrot.lane.b32.xlu0 %v515, 112
    %v572 = vpop.permute.xlu0 %571
    %573 = vrot.lane.b32.xlu0 %v516, 112
    %v574 = vpop.permute.xlu0 %573
    %v575 = vsel %vm234, %v572, %v574
    %v576 = vsel %vm234, %v574, %v572
    %v577 = vmul.f32 %v241, %v575
    %v578 = vmul.f32 %v245, %v576
    %579 = vrot.lane.b32.xlu0 %v515, 111
    %v580 = vpop.permute.xlu0 %579
    %581 = vrot.lane.b32.xlu0 %v516, 111
    %v582 = vpop.permute.xlu0 %581
    %v583 = vsel %vm254, %v580, %v582
    %v584 = vsel %vm254, %v582, %v580
    %v585 = vmul.f32 %v261, %v583
    %v586 = vmul.f32 %v265, %v584
    %588 = vset.pattern.permute.xlu0 0
    %589 = vperm.xlu0 %588, %v522
    %v590 = vpop.permute.xlu0 %589
    %vm592 = vcmask 654336
    %v594 = vsel %vm592, %v521, 0
    %596 = vmatprep.subr.mxu0 %v530
    %597 = vmatpush1.msra.mxu0 %v529
    %598 = vmatprep.subr.mxu0 %v538
    %599 = vmatpush1.msra.mxu0 %v537
    %600 = vmatprep.subr.mxu0 %v546
    %601 = vmatpush1.msra.mxu0 %v545
    %602 = vmatprep.subr.mxu0 %v554
    %603 = vmatpush1.msra.mxu0 %v553
    %604 = vmatprep.subr.mxu0 %v516
    %605 = vmatpush1.msra.mxu0 %v515
    %606 = vmatprep.subr.mxu0 %v562
    %607 = vmatpush1.msra.mxu0 %v561
    %608 = vmatprep.subr.mxu0 %v570
    %609 = vmatpush1.msra.mxu0 %v569
    %610 = vmatprep.subr.mxu0 %v578
    %611 = vmatpush1.msra.mxu0 %v577
    %612 = vmatprep.subr.mxu0 %v586
    %613 = vmatpush1.msra.mxu0 %v585
    %614 = vmatprep.subr.mxu0 %v66
    %615 = vmatpush1.msra.mxu0 %v65
    %616 = vmatprep.subr.mxu0 0.0
    %617 = vmatpush1.msra.mxu0 0.0
    %618 = vmatprep.subr.mxu0 0.0
    %619 = vmatpush1.msra.mxu0 0.0
    %620 = vmatprep.subr.mxu0 0.0
    %621 = vmatpush1.msra.mxu0 0.0
    %622 = vmatprep.subr.mxu0 0.0
    %623 = vmatpush1.msra.mxu0 0.0
    %624 = vmatprep.subr.mxu0 0.0
    %625 = vmatpush1.msra.mxu0 0.0
    %626 = vmatprep.subr.mxu0 0.0
    %627 = vmatpush1.msra.mxu0 0.0
    %628 = vmatprep.subr.mxu0 0.0
    %629 = vmatpush1.msra.mxu0 0.0
    %630 = vmatprep.subr.mxu0 0.0
    %631 = vmatpush1.msra.mxu0 0.0
    %632 = vmatprep.subr.mxu0 0.0
    %633 = vmatpush1.msra.mxu0 0.0
    %634 = vmatprep.subr.mxu0 0.0
    %635 = vmatpush1.msra.mxu0 0.0
    %636 = vmatprep.subr.mxu0 0.0
    %637 = vmatpush1.msra.mxu0 0.0
    %638 = vmatprep.subr.mxu0 0.0
    %639 = vmatpush1.msra.mxu0 0.0
    %640 = vmatprep.subr.mxu0 0.0
    %641 = vmatpush1.msra.mxu0 0.0
    %642 = vmatprep.subr.mxu0 0.0
    %643 = vmatpush1.msra.mxu0 0.0
    %644 = vmatprep.subr.mxu0 0.0
    %645 = vmatpush1.msra.mxu0 0.0
    %646 = vmatprep.subr.mxu0 0.0
    %647 = vmatpush1.msra.mxu0 0.0
    %648 = vmatprep.subr.mxu0 0.0
    %649 = vmatpush1.msra.mxu0 0.0
    %650 = vmatprep.subr.mxu0 0.0
    %651 = vmatpush1.msra.mxu0 0.0
    %652 = vmatprep.subr.mxu0 0.0
    %653 = vmatpush1.msra.mxu0 0.0
    %654 = vmatprep.subr.mxu0 0.0
    %655 = vmatpush1.msra.mxu0 0.0
    %656 = vmatprep.subr.mxu0 0.0
    %657 = vmatpush1.msra.mxu0 0.0
    %658 = vmatprep.subr.mxu0 0.0
    %659 = vmatpush1.msra.mxu0 0.0
    %660 = vmatprep.mubr.f32.mxu0 0.0
    %661 = vmatmul.mubr.f32.gmra.mrb[0].mxu0 %v594
    %v662 = vpop.f32.mrb[0].mxu0
    %v663 = vadd.f32 %v590, %v662
    %v664 = vpop.f32.mrb[0].mxu0
    %v665 = vadd.f32 %v590, %v664
    %666 = vdwg.mxu0
    %667 = vst [vmem:[#allocation7] sm:$0xff] %v663
    %668 = vst [vmem:[#allocation7 + $0x8] sm:$0xff] %v665
    %669 = vrot.lane.b32.xlu0 %v519, 17
    %v670 = vpop.permute.xlu0 %669
    %671 = vrot.lane.b32.xlu0 %v520, 17
    %v672 = vpop.permute.xlu0 %671
    %v673 = vsel %vm114, %v670, %v672
    %v674 = vsel %vm114, %v672, %v670
    %v675 = vmul.f32 %v121, %v674
    %v676 = vmul.f32 %v125, %v673
    %677 = vrot.lane.b32.xlu0 %v519, 16
    %v678 = vpop.permute.xlu0 %677
    %679 = vrot.lane.b32.xlu0 %v520, 16
    %v680 = vpop.permute.xlu0 %679
    %v681 = vsel %vm134, %v678, %v680
    %v682 = vsel %vm134, %v680, %v678
    %v683 = vmul.f32 %v141, %v682
    %v684 = vmul.f32 %v145, %v681
    %685 = vrot.lane.b32.xlu0 %v519, 15
    %v686 = vpop.permute.xlu0 %685
    %687 = vrot.lane.b32.xlu0 %v520, 15
    %v688 = vpop.permute.xlu0 %687
    %v689 = vsel %vm154, %v686, %v688
    %v690 = vsel %vm154, %v688, %v686
    %v691 = vmul.f32 %v161, %v690
    %v692 = vmul.f32 %v165, %v689
    %693 = vrot.lane.b32.xlu0 %v519, 1
    %v694 = vpop.permute.xlu0 %693
    %695 = vrot.lane.b32.xlu0 %v520, 1
    %v696 = vpop.permute.xlu0 %695
    %v697 = vsel %vm174, %v694, %v696
    %v698 = vsel %vm174, %v696, %v694
    %v699 = vmul.f32 %v181, %v698
    %v700 = vmul.f32 %v185, %v697
    %701 = vrot.lane.b32.xlu0 %v519, 127
    %v702 = vpop.permute.xlu0 %701
    %703 = vrot.lane.b32.xlu0 %v520, 127
    %v704 = vpop.permute.xlu0 %703
    %v705 = vsel %vm194, %v702, %v704
    %v706 = vsel %vm194, %v704, %v702
    %v707 = vmul.f32 %v201, %v705
    %v708 = vmul.f32 %v205, %v706
    %709 = vrot.lane.b32.xlu0 %v519, 113
    %v710 = vpop.permute.xlu0 %709
    %711 = vrot.lane.b32.xlu0 %v520, 113
    %v712 = vpop.permute.xlu0 %711
    %v713 = vsel %vm214, %v710, %v712
    %v714 = vsel %vm214, %v712, %v710
    %v715 = vmul.f32 %v221, %v713
    %v716 = vmul.f32 %v225, %v714
    %717 = vrot.lane.b32.xlu0 %v519, 112
    %v718 = vpop.permute.xlu0 %717
    %719 = vrot.lane.b32.xlu0 %v520, 112
    %v720 = vpop.permute.xlu0 %719
    %v721 = vsel %vm234, %v718, %v720
    %v722 = vsel %vm234, %v720, %v718
    %v723 = vmul.f32 %v241, %v721
    %v724 = vmul.f32 %v245, %v722
    %725 = vrot.lane.b32.xlu0 %v519, 111
    %v726 = vpop.permute.xlu0 %725
    %727 = vrot.lane.b32.xlu0 %v520, 111
    %v728 = vpop.permute.xlu0 %727
    %v729 = vsel %vm254, %v726, %v728
    %v730 = vsel %vm254, %v728, %v726
    %v731 = vmul.f32 %v261, %v729
    %v732 = vmul.f32 %v265, %v730
    %733 = vmatprep.subr.mxu0 %v676
    %734 = vmatpush1.msra.mxu0 %v675
    %735 = vmatprep.subr.mxu0 %v684
    %736 = vmatpush1.msra.mxu0 %v683
    %737 = vmatprep.subr.mxu0 %v692
    %738 = vmatpush1.msra.mxu0 %v691
    %739 = vmatprep.subr.mxu0 %v700
    %740 = vmatpush1.msra.mxu0 %v699
    %741 = vmatprep.subr.mxu0 %v520
    %742 = vmatpush1.msra.mxu0 %v519
    %743 = vmatprep.subr.mxu0 %v708
    %744 = vmatpush1.msra.mxu0 %v707
    %745 = vmatprep.subr.mxu0 %v716
    %746 = vmatpush1.msra.mxu0 %v715
    %747 = vmatprep.subr.mxu0 %v724
    %748 = vmatpush1.msra.mxu0 %v723
    %749 = vmatprep.subr.mxu0 %v732
    %750 = vmatpush1.msra.mxu0 %v731
    %751 = vmatprep.subr.mxu0 %v69
    %752 = vmatpush1.msra.mxu0 %v68
    %753 = vmatprep.subr.mxu0 0.0
    %754 = vmatpush1.msra.mxu0 0.0
    %755 = vmatprep.subr.mxu0 0.0
    %756 = vmatpush1.msra.mxu0 0.0
    %757 = vmatprep.subr.mxu0 0.0
    %758 = vmatpush1.msra.mxu0 0.0
    %759 = vmatprep.subr.mxu0 0.0
    %760 = vmatpush1.msra.mxu0 0.0
    %761 = vmatprep.subr.mxu0 0.0
    %762 = vmatpush1.msra.mxu0 0.0
    %763 = vmatprep.subr.mxu0 0.0
    %764 = vmatpush1.msra.mxu0 0.0
    %765 = vmatprep.subr.mxu0 0.0
    %766 = vmatpush1.msra.mxu0 0.0
    %767 = vmatprep.subr.mxu0 0.0
    %768 = vmatpush1.msra.mxu0 0.0
    %769 = vmatprep.subr.mxu0 0.0
    %770 = vmatpush1.msra.mxu0 0.0
    %771 = vmatprep.subr.mxu0 0.0
    %772 = vmatpush1.msra.mxu0 0.0
    %773 = vmatprep.subr.mxu0 0.0
    %774 = vmatpush1.msra.mxu0 0.0
    %775 = vmatprep.subr.mxu0 0.0
    %776 = vmatpush1.msra.mxu0 0.0
    %777 = vmatprep.subr.mxu0 0.0
    %778 = vmatpush1.msra.mxu0 0.0
    %779 = vmatprep.subr.mxu0 0.0
    %780 = vmatpush1.msra.mxu0 0.0
    %781 = vmatprep.subr.mxu0 0.0
    %782 = vmatpush1.msra.mxu0 0.0
    %783 = vmatprep.subr.mxu0 0.0
    %784 = vmatpush1.msra.mxu0 0.0
    %785 = vmatprep.subr.mxu0 0.0
    %786 = vmatpush1.msra.mxu0 0.0
    %787 = vmatprep.subr.mxu0 0.0
    %788 = vmatpush1.msra.mxu0 0.0
    %789 = vmatprep.subr.mxu0 0.0
    %790 = vmatpush1.msra.mxu0 0.0
    %791 = vmatprep.subr.mxu0 0.0
    %792 = vmatpush1.msra.mxu0 0.0
    %793 = vmatprep.subr.mxu0 0.0
    %794 = vmatpush1.msra.mxu0 0.0
    %795 = vmatprep.subr.mxu0 0.0
    %796 = vmatpush1.msra.mxu0 0.0
    %797 = vmatprep.mubr.f32.mxu0 0.0
    %798 = vmatmul.mubr.f32.gmra.mrb[0].mxu0 %v594
    %v799 = vpop.f32.mrb[0].mxu0
    %v800 = vadd.f32 %v590, %v799
    %v801 = vpop.f32.mrb[0].mxu0
    %v802 = vadd.f32 %v590, %v801
    %803 = vdwg.mxu0
    %s804 = scalar_lea.vmem [#allocation7], 16
    %805 = vst [vmem:[%s804] sm:$0xff] %v800
    %806 = vst [vmem:[%s804 + $0x8] sm:$0xff] %v802
    // Predicated region
    $region34: #{tpu_custom_call.1} parent=1 // pred_check
      _
    $region35: #{tpu_custom_call.1} parent=1 // pred_check_branch
      %808 = sbr.rel (0) target = $region37
    $region36: #{tpu_custom_call.1} parent=1 // pred_region
      %s810 = ssub.s32 512, 512
      %811 = vsyncadd [#allocation4], %s810
      %s812 = sshll.u32 [#allocation7], 4
      %s813 = int_to_ptr.vmem [resolvable:$true] %s812
      %818 = dma.vmem_to_hbm [thread:$0]  %s813, 512, %s6, [#allocation4], 256, 256, 16
    $region37: #{tpu_custom_call.1} parent=1 // pred_fallthru
      _
    // Predicated region
    $region38: #{tpu_custom_call.1} parent=1 // pred_check
      _
    $region39: #{tpu_custom_call.1} parent=1 // pred_check_branch
      %820 = sbr.rel (0) target = $region41
    $region40: #{tpu_custom_call.1} parent=1 // pred_region
      %821 = dma.done [#allocation4], 512
    $region41: #{tpu_custom_call.1} parent=1 // pred_fallthru
      _
    %822 = vsyncpa [#allocation3], 1
    %823 = vsyncpa [#allocation6], 1
    %824 = vsyncpa [#allocation4], 1

</llo_original>
